<compile_context>
chip_gen: v7x
topology: tpu7x:2x2x1
jax: 0.10.0
libtpu: 0.0.40
codegen_flags: <defaults>
</compile_context>

<pallas_src>
import jax
import jax.numpy as jnp
from jax.experimental import pallas as pl
from jax.experimental.pallas import tpu as pltpu


def _round_up(x, m):
    return (x + m - 1) // m * m


def _fused_deconv_add_kernel(x_ref, w_ref, b_ref, r_ref, o_ref):
    # (bm, Cin) @ (Cin, Cout*4) on the MXU, f32 accumulation,
    # fused epilogue: + bias + residual (x2 interior), store in output dtype.
    acc = jnp.dot(x_ref[...], w_ref[...], preferred_element_type=jnp.float32)
    acc = acc + b_ref[...].astype(jnp.float32)
    acc = acc + r_ref[...].astype(jnp.float32)
    o_ref[...] = acc.astype(o_ref.dtype)


def _fused_deconv_add(x2d, w2d, b2d, r2d, out_dtype, *, bm_max=512):
    """O = x2d @ w2d + b2d + r2d, row-tiled. Handles M not divisible by the tile."""
    M, K = x2d.shape
    _, Nc = w2d.shape
    bm = min(bm_max, _round_up(M, 8))          # big row tile, multiple of 8 sublanes
    Mpad = _round_up(M, bm)
    if Mpad != M:
        x2d = jnp.pad(x2d, ((0, Mpad - M), (0, 0)))
        r2d = jnp.pad(r2d, ((0, Mpad - M), (0, 0)))

    out = pl.pallas_call(
        _fused_deconv_add_kernel,
        out_shape=jax.ShapeDtypeStruct((Mpad, Nc), out_dtype),
        grid=(Mpad // bm,),
        in_specs=[
            pl.BlockSpec((bm, K), lambda i: (i, 0)),    # streaming x1 rows
            pl.BlockSpec((K, Nc), lambda i: (0, 0)),    # weight, resident
            pl.BlockSpec((1, Nc), lambda i: (0, 0)),    # bias, resident
            pl.BlockSpec((bm, Nc), lambda i: (i, 0)),   # residual (x2 interior) rows
        ],
        out_specs=pl.BlockSpec((bm, Nc), lambda i: (i, 0)),
        compiler_params=pltpu.CompilerParams(dimension_semantics=("parallel",)),
    )(x2d, w2d, b2d, r2d)

    if Mpad != M:
        out = out[:M]
    return out


def up_add(x1, x2, weight, bias):
    """UpAdd.forward: x1 -> ConvTranspose2d(in_ch, out_ch, 2, 2) -> pad -> + x2.

    x1:     (N, Cin, H, W)        NCHW
    x2:     (N, Cout, H2, W2)     NCHW (H2 >= 2H, W2 >= 2W)
    weight: (Cin, Cout, 2, 2)     PyTorch ConvTranspose2d weight layout
    bias:   (Cout,)
    """
    N, Cin, H, W = x1.shape
    Cin_w, Cout, kH, kW = weight.shape
    assert Cin_w == Cin and kH == 2 and kW == 2
    Nb, Cout_b, H2, W2 = x2.shape
    assert Nb == N and Cout_b == Cout

    diff_h = H2 - 2 * H
    diff_w = W2 - 2 * W
    # TODO(synk): negative diffs (cropping) not supported; CBDNet uses non-negative pads.
    assert diff_h >= 0 and diff_w >= 0
    ptop = diff_h // 2
    pleft = diff_w // 2

    # Matmul operands (kept in model dtype; f32 accumulation happens in-kernel).
    # x1 is the smallest tensor, so its NCHW->NHWC transpose is the cheapest glue.
    X = jnp.transpose(x1, (0, 2, 3, 1)).reshape(N * H * W, Cin)
    Wm = weight.reshape(Cin, Cout * kH * kW)          # columns ordered (co, kh, kw)
    Bm = jnp.repeat(bias, kH * kW)[None, :]           # bias per (co, kh, kw) column

    # Residual: interior of x2 that aligns with the deconv output, rearranged so each
    # matmul row gets its matching (co, kh, kw) tile. Only the interior is read.
    x2i = jax.lax.slice(
        x2, (0, 0, ptop, pleft), (N, Cout, ptop + 2 * H, pleft + 2 * W)
    )
    R = jnp.transpose(
        x2i.reshape(N, Cout, H, kH, W, kW), (0, 2, 4, 1, 3, 5)
    ).reshape(N * H * W, Cout * kH * kW)

    # Fused: deconv matmul + bias + residual add, output already in x2.dtype.
    O = _fused_deconv_add(X, Wm, Bm, R, x2.dtype)

    # Scatter the 4 sub-pixel outputs back into NCHW (pure layout, XLA glue).
    y = O.reshape(N, H, W, Cout, kH, kW)
    y = jnp.transpose(y, (0, 3, 1, 4, 2, 5)).reshape(N, Cout, 2 * H, 2 * W)

    if diff_h == 0 and diff_w == 0:
        return y
    # Border of F.pad(x1) is zero, so padded-region result == x2: write interior only.
    return jax.lax.dynamic_update_slice(x2, y, (0, 0, ptop, pleft))


def _reference(x1, x2, weight, bias):
    N, Cin, H, W = x1.shape
    Cout = weight.shape[1]
    y = jnp.einsum("nihw,ioab->nohawb", x1, weight).reshape(N, Cout, 2 * H, 2 * W)
    y = y + bias[None, :, None, None]
    diff_h = x2.shape[2] - y.shape[2]
    diff_w = x2.shape[3] - y.shape[3]
    pleft = diff_w // 2
    ptop = diff_h // 2
    y = jnp.pad(
        y, ((0, 0), (0, 0), (ptop, diff_h - ptop), (pleft, diff_w - pleft))
    )
    return y + x2


if __name__ == "__main__":
    key = jax.random.PRNGKey(0)
    k1, k2, kw, kb = jax.random.split(key, 4)

    N, Cin, Cout, H, W = 2, 4, 4, 8, 8
    x1 = jax.random.normal(k1, (N, Cin, H, W), jnp.float32)
    weight = 0.1 * jax.random.normal(kw, (Cin, Cout, 2, 2), jnp.float32)
    bias = 0.1 * jax.random.normal(kb, (Cout,), jnp.float32)

    # Case 1: x2 larger than 2H x 2W (exercises the "free pad" interior-update path).
    x2 = jax.random.normal(k2, (N, Cout, 2 * H + 1, 2 * W + 2), jnp.float32)
    out = up_add(x1, x2, weight, bias)
    jax.block_until_ready(out)
    ref = _reference(x1, x2, weight, bias)
    assert out.shape == ref.shape and out.dtype == ref.dtype
    assert jnp.allclose(out, ref, atol=1e-5, rtol=1e-5), "mismatch vs reference (pad)"

    # Case 2: exact 2H x 2W (no padding).
    x2b = jax.random.normal(k2, (N, Cout, 2 * H, 2 * W), jnp.float32)
    out_b = up_add(x1, x2b, weight, bias)
    jax.block_until_ready(out_b)
    ref_b = _reference(x1, x2b, weight, bias)
    assert out_b.shape == ref_b.shape and out_b.dtype == ref_b.dtype
    assert jnp.allclose(out_b, ref_b, atol=1e-5, rtol=1e-5), "mismatch vs reference"

    print("KERNEL_OK")
</pallas_src>

<mosaic_0001>
module attributes {stable_mosaic.version = 11 : i64} {
  func.func @_fused_deconv_add_kernel(%arg0: i32, %arg1: memref<128x4xf32, #tpu.memory_space<vmem>>, %arg2: memref<4x16xf32, #tpu.memory_space<vmem>>, %arg3: memref<1x16xf32, #tpu.memory_space<vmem>>, %arg4: memref<128x16xf32, #tpu.memory_space<vmem>>, %arg5: memref<128x16xf32, #tpu.memory_space<vmem>>) attributes {dimension_semantics = [#tpu.dimension_semantics<parallel>], iteration_bounds = array<i64: 1>, scalar_prefetch = 0 : i64, scratch_operands = 0 : i64, tpu.core_type = #tpu.core_type<tc>, window_params = [{transform_indices = @transform_0, window_bounds = array<i64: 128, 4>}, {pipeline_mode = #tpu.pipeline_mode<synchronous>, transform_indices = @transform_1, window_bounds = array<i64: 4, 16>}, {pipeline_mode = #tpu.pipeline_mode<synchronous>, transform_indices = @transform_2, window_bounds = array<i64: 1, 16>}, {transform_indices = @transform_3, window_bounds = array<i64: 128, 16>}, {transform_indices = @transform_4, window_bounds = array<i64: 128, 16>}]} {
    %c0 = arith.constant 0 : index
    %c0_0 = arith.constant 0 : index
    %0 = vector.load %arg1[%c0, %c0_0] : memref<128x4xf32, #tpu.memory_space<vmem>>, vector<128x4xf32>
    %c0_1 = arith.constant 0 : index
    %c0_2 = arith.constant 0 : index
    %1 = vector.load %arg2[%c0_1, %c0_2] : memref<4x16xf32, #tpu.memory_space<vmem>>, vector<4x16xf32>
    %cst = arith.constant dense<0.000000e+00> : vector<128x16xf32>
    %2 = tpu.matmul %0, %1, %cst {dimension_numbers = #tpu.dot_dimension_numbers<[1], [0], [0], [1], [0, 0, 1, 1], [], []>} : vector<128x4xf32>, vector<4x16xf32>, vector<128x16xf32> -> vector<128x16xf32>
    %c0_3 = arith.constant 0 : index
    %c0_4 = arith.constant 0 : index
    %3 = vector.load %arg3[%c0_3, %c0_4] : memref<1x16xf32, #tpu.memory_space<vmem>>, vector<1x16xf32>
    %4 = vector.broadcast %3 : vector<1x16xf32> to vector<128x16xf32>
    %5 = arith.addf %2, %4 : vector<128x16xf32>
    %c0_5 = arith.constant 0 : index
    %c0_6 = arith.constant 0 : index
    %6 = vector.load %arg4[%c0_5, %c0_6] : memref<128x16xf32, #tpu.memory_space<vmem>>, vector<128x16xf32>
    %7 = arith.addf %5, %6 : vector<128x16xf32>
    %c0_7 = arith.constant 0 : index
    %c0_8 = arith.constant 0 : index
    %8 = vector.load %arg5[%c0_7, %c0_8] : memref<128x16xf32, #tpu.memory_space<vmem>>, vector<128x16xf32>
    tpu.vector_store %arg5[%c0_7, %c0_8], %7 {strides = array<i32>} : memref<128x16xf32, #tpu.memory_space<vmem>>, vector<128x16xf32>,
    return
  }
  func.func @transform_0(%arg0: i32) -> (i32, i32) {
    %c0_i32 = arith.constant 0 : i32
    %c0_i32_0 = arith.constant 0 : i32
    return %arg0, %c0_i32 : i32, i32
  }
  func.func @transform_1(%arg0: i32) -> (i32, i32) {
    %c0_i32 = arith.constant 0 : i32
    %c0_i32_0 = arith.constant 0 : i32
    %c0_i32_1 = arith.constant 0 : i32
    return %c0_i32, %c0_i32_0 : i32, i32
  }
  func.func @transform_2(%arg0: i32) -> (i32, i32) {
    %c0_i32 = arith.constant 0 : i32
    %c0_i32_0 = arith.constant 0 : i32
    %c0_i32_1 = arith.constant 0 : i32
    return %c0_i32, %c0_i32_0 : i32, i32
  }
  func.func @transform_3(%arg0: i32) -> (i32, i32) {
    %c0_i32 = arith.constant 0 : i32
    %c0_i32_0 = arith.constant 0 : i32
    return %arg0, %c0_i32 : i32, i32
  }
  func.func @transform_4(%arg0: i32) -> (i32, i32) {
    %c0_i32 = arith.constant 0 : i32
    %c0_i32_0 = arith.constant 0 : i32
    return %arg0, %c0_i32 : i32, i32
  }
}

</mosaic_0001>

<llo_original>
// kernel: tpu_custom_call.1
$region0: #{tpu_custom_call.1}
  #allocation0 [shape = 'u32[]', space=smem, size = 0x4, offset = 0x4, fixed_abs, tag = 'smem constant byte address 0x4 - core index']
  #allocation1 [shape = 'u32[144,128]{1,0:T(1,128)}', space=vmem, size = 0x12000, scoped, tag = 'internal scratch']
  %s0 = inlined_call_operand.vmem [shape: f32[128,4], index: 0, kind: input, shape index: {}]
  %s1 = inlined_call_operand.vmem [shape: f32[4,16], index: 1, kind: input, shape index: {}]
  %s2 = inlined_call_operand.vmem [shape: f32[1,16], index: 2, kind: input, shape index: {}]
  %s3 = inlined_call_operand.vmem [shape: f32[128,16], index: 3, kind: input, shape index: {}]
  %s4 = inlined_call_operand.vmem [shape: f32[128,16], index: 4, kind: output, shape index: {}]
  %s5 = sld [smem:[#allocation0]]
  $region26: #{tpu_custom_call.1} parent=0
    _
  %s7 = ssub.s32 1, %s5
  %s8 = scalar_select 0, %s7, %s5
  // Predicated region
  $region2: #{tpu_custom_call.1} parent=0 // pred_check
    _
  $region3: #{tpu_custom_call.1} parent=0 // pred_check_branch
    %10 = sbr.rel (0) target = $region5
  $region4: #{tpu_custom_call.1} parent=0 // pred_region
    _
  $region5: #{tpu_custom_call.1} parent=0 // pred_fallthru
    _
  // Predicated region
  $region6: #{tpu_custom_call.1} parent=0 // pred_check
    _
  $region7: #{tpu_custom_call.1} parent=0 // pred_check_branch
    %12 = sbr.rel (0) target = $region9
  $region8: #{tpu_custom_call.1} parent=0 // pred_region
    _
  $region9: #{tpu_custom_call.1} parent=0 // pred_fallthru
    _
  // Predicated region
  $region10: #{tpu_custom_call.1} parent=0 // pred_check
    _
  $region11: #{tpu_custom_call.1} parent=0 // pred_check_branch
    %14 = sbr.rel (0) target = $region13
  $region12: #{tpu_custom_call.1} parent=0 // pred_region
    _
  $region13: #{tpu_custom_call.1} parent=0 // pred_fallthru
    _
  // Predicated region
  $region14: #{tpu_custom_call.1} parent=0 // pred_check
    _
  $region15: #{tpu_custom_call.1} parent=0 // pred_check_branch
    %16 = sbr.rel (0) target = $region17
  $region16: #{tpu_custom_call.1} parent=0 // pred_region
    _
  $region17: #{tpu_custom_call.1} parent=0 // pred_fallthru
    _
  %v17 = vld [vmem:[%s0] sm:$0xff]
  %v18 = vld [vmem:[%s0 + $0x8] sm:$0xff]
  %v19 = vld [vmem:[%s0 + $0x10] sm:$0xff]
  %v20 = vld [vmem:[%s0 + $0x18] sm:$0xff]
  %v21 = vld [vmem:[%s0 + $0x20] sm:$0xff]
  %v22 = vld [vmem:[%s0 + $0x28] sm:$0xff]
  %v23 = vld [vmem:[%s0 + $0x30] sm:$0xff]
  %v24 = vld [vmem:[%s0 + $0x38] sm:$0xff]
  %v25 = vld [vmem:[%s0 + $0x40] sm:$0xff]
  %v26 = vld [vmem:[%s0 + $0x48] sm:$0xff]
  %v27 = vld [vmem:[%s0 + $0x50] sm:$0xff]
  %v28 = vld [vmem:[%s0 + $0x58] sm:$0xff]
  %v29 = vld [vmem:[%s0 + $0x60] sm:$0xff]
  %v30 = vld [vmem:[%s0 + $0x68] sm:$0xff]
  %v31 = vld [vmem:[%s0 + $0x70] sm:$0xff]
  %v32 = vld [vmem:[%s0 + $0x78] sm:$0xff]
  %v33 = vld [vmem:[%s1] sm:$0xf]
  %v34 = vld [vmem:[%s2] sm:$0x1]
  %v36 = vlaneseq
  %v37 = vshrl.u32 %v36, 7
  %v38 = vsub.s32 0, %v37
  %v39 = vrot.slane %v34, %v38
  %vm41 = vcmask 31744
  %v43 = vsel %vm41, %v17, 0
  %v46 = vsel %vm41, %v18, 0
  %v49 = vsel %vm41, %v19, 0
  %v52 = vsel %vm41, %v20, 0
  %v55 = vsel %vm41, %v21, 0
  %v58 = vsel %vm41, %v22, 0
  %v61 = vsel %vm41, %v23, 0
  %v64 = vsel %vm41, %v24, 0
  %v67 = vsel %vm41, %v25, 0
  %v70 = vsel %vm41, %v26, 0
  %v73 = vsel %vm41, %v27, 0
  %v76 = vsel %vm41, %v28, 0
  %v79 = vsel %vm41, %v29, 0
  %v82 = vsel %vm41, %v30, 0
  %v85 = vsel %vm41, %v31, 0
  %v88 = vsel %vm41, %v32, 0
  %vm90 = vcmask 1043456
  %v92 = vsel %vm90, %v33, 0
  %94 = vmatprep.subr.mxu0 0.0
  %95 = vmatpush1.msra.mxu0 %v92
  %96 = vmatprep.subr.mxu0 0.0
  %97 = vmatpush1.msra.mxu0 0.0
  %98 = vmatprep.subr.mxu0 0.0
  %99 = vmatpush1.msra.mxu0 0.0
  %100 = vmatprep.subr.mxu0 0.0
  %101 = vmatpush1.msra.mxu0 0.0
  %102 = vmatprep.subr.mxu0 0.0
  %103 = vmatpush1.msra.mxu0 0.0
  %104 = vmatprep.subr.mxu0 0.0
  %105 = vmatpush1.msra.mxu0 0.0
  %106 = vmatprep.subr.mxu0 0.0
  %107 = vmatpush1.msra.mxu0 0.0
  %108 = vmatprep.subr.mxu0 0.0
  %109 = vmatpush1.msra.mxu0 0.0
  %110 = vmatprep.subr.mxu0 0.0
  %111 = vmatpush1.msra.mxu0 0.0
  %112 = vmatprep.subr.mxu0 0.0
  %113 = vmatpush1.msra.mxu0 0.0
  %114 = vmatprep.subr.mxu0 0.0
  %115 = vmatpush1.msra.mxu0 0.0
  %116 = vmatprep.subr.mxu0 0.0
  %117 = vmatpush1.msra.mxu0 0.0
  %118 = vmatprep.subr.mxu0 0.0
  %119 = vmatpush1.msra.mxu0 0.0
  %120 = vmatprep.subr.mxu0 0.0
  %121 = vmatpush1.msra.mxu0 0.0
  %122 = vmatprep.subr.mxu0 0.0
  %123 = vmatpush1.msra.mxu0 0.0
  %124 = vmatprep.subr.mxu0 0.0
  %125 = vmatpush1.msra.mxu0 0.0
  %126 = vmatprep.subr.mxu0 0.0
  %127 = vmatpush1.msra.mxu0 0.0
  %128 = vmatprep.subr.mxu0 0.0
  %129 = vmatpush1.msra.mxu0 0.0
  %130 = vmatprep.subr.mxu0 0.0
  %131 = vmatpush1.msra.mxu0 0.0
  %132 = vmatprep.subr.mxu0 0.0
  %133 = vmatpush1.msra.mxu0 0.0
  %134 = vmatprep.subr.mxu0 0.0
  %135 = vmatpush1.msra.mxu0 0.0
  %136 = vmatprep.subr.mxu0 0.0
  %137 = vmatpush1.msra.mxu0 0.0
  %138 = vmatprep.subr.mxu0 0.0
  %139 = vmatpush1.msra.mxu0 0.0
  %140 = vmatprep.subr.mxu0 0.0
  %141 = vmatpush1.msra.mxu0 0.0
  %142 = vmatprep.subr.mxu0 0.0
  %143 = vmatpush1.msra.mxu0 0.0
  %144 = vmatprep.subr.mxu0 0.0
  %145 = vmatpush1.msra.mxu0 0.0
  %146 = vmatprep.subr.mxu0 0.0
  %147 = vmatpush1.msra.mxu0 0.0
  %148 = vmatprep.subr.mxu0 0.0
  %149 = vmatpush1.msra.mxu0 0.0
  %150 = vmatprep.subr.mxu0 0.0
  %151 = vmatpush1.msra.mxu0 0.0
  %152 = vmatprep.subr.mxu0 0.0
  %153 = vmatpush1.msra.mxu0 0.0
  %154 = vmatprep.subr.mxu0 0.0
  %155 = vmatpush1.msra.mxu0 0.0
  %156 = vmatprep.subr.mxu0 0.0
  %157 = vmatpush1.msra.mxu0 0.0
  %158 = vmatprep.mubr.f32.mxu0 0.0
  %159 = vmatmul.mubr.f32.gmra.mrb[0].mxu0 %v43
  %v160 = vpop.f32.mrb[0].mxu0
  %v161 = vadd.f32 %v39, %v160
  %v162 = vpop.f32.mrb[0].mxu0
  %163 = vmatprep.mubr.f32.mxu0 0.0
  %164 = vmatmul.mubr.f32.gmra.mrb[0].mxu0 %v46
  %v165 = vpop.f32.mrb[0].mxu0
  %v166 = vadd.f32 %v39, %v165
  %v167 = vpop.f32.mrb[0].mxu0
  %168 = vmatprep.mubr.f32.mxu0 0.0
  %169 = vmatmul.mubr.f32.gmra.mrb[0].mxu0 %v49
  %v170 = vpop.f32.mrb[0].mxu0
  %v171 = vadd.f32 %v39, %v170
  %v172 = vpop.f32.mrb[0].mxu0
  %173 = vmatprep.mubr.f32.mxu0 0.0
  %174 = vmatmul.mubr.f32.gmra.mrb[0].mxu0 %v52
  %v175 = vpop.f32.mrb[0].mxu0
  %v176 = vadd.f32 %v39, %v175
  %v177 = vpop.f32.mrb[0].mxu0
  %178 = vmatprep.mubr.f32.mxu0 0.0
  %179 = vmatmul.mubr.f32.gmra.mrb[0].mxu0 %v55
  %v180 = vpop.f32.mrb[0].mxu0
  %v181 = vadd.f32 %v39, %v180
  %v182 = vpop.f32.mrb[0].mxu0
  %183 = vmatprep.mubr.f32.mxu0 0.0
  %184 = vmatmul.mubr.f32.gmra.mrb[0].mxu0 %v58
  %v185 = vpop.f32.mrb[0].mxu0
  %v186 = vadd.f32 %v39, %v185
  %v187 = vpop.f32.mrb[0].mxu0
  %188 = vmatprep.mubr.f32.mxu0 0.0
  %189 = vmatmul.mubr.f32.gmra.mrb[0].mxu0 %v61
  %v190 = vpop.f32.mrb[0].mxu0
  %v191 = vadd.f32 %v39, %v190
  %v192 = vpop.f32.mrb[0].mxu0
  %193 = vmatprep.mubr.f32.mxu0 0.0
  %194 = vmatmul.mubr.f32.gmra.mrb[0].mxu0 %v64
  %v195 = vpop.f32.mrb[0].mxu0
  %v196 = vadd.f32 %v39, %v195
  %v197 = vpop.f32.mrb[0].mxu0
  %198 = vmatprep.mubr.f32.mxu0 0.0
  %199 = vmatmul.mubr.f32.gmra.mrb[0].mxu0 %v67
  %v200 = vpop.f32.mrb[0].mxu0
  %v201 = vadd.f32 %v39, %v200
  %v202 = vpop.f32.mrb[0].mxu0
  %203 = vmatprep.mubr.f32.mxu0 0.0
  %204 = vmatmul.mubr.f32.gmra.mrb[0].mxu0 %v70
  %v205 = vpop.f32.mrb[0].mxu0
  %v206 = vadd.f32 %v39, %v205
  %v207 = vpop.f32.mrb[0].mxu0
  %208 = vmatprep.mubr.f32.mxu0 0.0
  %209 = vmatmul.mubr.f32.gmra.mrb[0].mxu0 %v73
  %v210 = vpop.f32.mrb[0].mxu0
  %v211 = vadd.f32 %v39, %v210
  %v212 = vpop.f32.mrb[0].mxu0
  %213 = vmatprep.mubr.f32.mxu0 0.0
  %214 = vmatmul.mubr.f32.gmra.mrb[0].mxu0 %v76
  %v215 = vpop.f32.mrb[0].mxu0
  %v216 = vadd.f32 %v39, %v215
  %v217 = vpop.f32.mrb[0].mxu0
  %218 = vmatprep.mubr.f32.mxu0 0.0
  %219 = vmatmul.mubr.f32.gmra.mrb[0].mxu0 %v79
  %v220 = vpop.f32.mrb[0].mxu0
  %v221 = vadd.f32 %v39, %v220
  %v222 = vpop.f32.mrb[0].mxu0
  %223 = vmatprep.mubr.f32.mxu0 0.0
  %224 = vmatmul.mubr.f32.gmra.mrb[0].mxu0 %v82
  %v225 = vpop.f32.mrb[0].mxu0
  %v226 = vadd.f32 %v39, %v225
  %v227 = vpop.f32.mrb[0].mxu0
  %228 = vmatprep.mubr.f32.mxu0 0.0
  %229 = vmatmul.mubr.f32.gmra.mrb[0].mxu0 %v85
  %v230 = vpop.f32.mrb[0].mxu0
  %v231 = vadd.f32 %v39, %v230
  %v232 = vpop.f32.mrb[0].mxu0
  %233 = vmatprep.mubr.f32.mxu0 0.0
  %234 = vmatmul.mubr.f32.gmra.mrb[0].mxu0 %v88
  %v235 = vpop.f32.mrb[0].mxu0
  %v236 = vadd.f32 %v39, %v235
  %v237 = vpop.f32.mrb[0].mxu0
  %238 = vdwg.mxu0
  %v239 = vld [vmem:[%s3] sm:$0xff]
  %v240 = vld [vmem:[%s3 + $0x8] sm:$0xff]
  %v241 = vld [vmem:[%s3 + $0x10] sm:$0xff]
  %v242 = vld [vmem:[%s3 + $0x18] sm:$0xff]
  %v243 = vld [vmem:[%s3 + $0x20] sm:$0xff]
  %v244 = vld [vmem:[%s3 + $0x28] sm:$0xff]
  %v245 = vld [vmem:[%s3 + $0x30] sm:$0xff]
  %v246 = vld [vmem:[%s3 + $0x38] sm:$0xff]
  %v247 = vld [vmem:[%s3 + $0x40] sm:$0xff]
  %v248 = vld [vmem:[%s3 + $0x48] sm:$0xff]
  %v249 = vld [vmem:[%s3 + $0x50] sm:$0xff]
  %v250 = vld [vmem:[%s3 + $0x58] sm:$0xff]
  %v251 = vld [vmem:[%s3 + $0x60] sm:$0xff]
  %v252 = vld [vmem:[%s3 + $0x68] sm:$0xff]
  %v253 = vld [vmem:[%s3 + $0x70] sm:$0xff]
  %v254 = vld [vmem:[%s3 + $0x78] sm:$0xff]
  %v255 = vadd.f32 %v161, %v239
  %v256 = vadd.f32 %v166, %v240
  %v257 = vadd.f32 %v171, %v241
  %v258 = vadd.f32 %v176, %v242
  %v259 = vadd.f32 %v181, %v243
  %v260 = vadd.f32 %v186, %v244
  %v261 = vadd.f32 %v191, %v245
  %v262 = vadd.f32 %v196, %v246
  %v263 = vadd.f32 %v201, %v247
  %v264 = vadd.f32 %v206, %v248
  %v265 = vadd.f32 %v211, %v249
  %v266 = vadd.f32 %v216, %v250
  %v267 = vadd.f32 %v221, %v251
  %v268 = vadd.f32 %v226, %v252
  %v269 = vadd.f32 %v231, %v253
  %v270 = vadd.f32 %v236, %v254
  %vm271 = vcmask 130048
  %272 = vst.msk [vmem:[%s4] sm:$0xff] %vm271, %v255
  %273 = vst.msk [vmem:[%s4 + $0x8] sm:$0xff] %vm271, %v256
  %274 = vst.msk [vmem:[%s4 + $0x10] sm:$0xff] %vm271, %v257
  %275 = vst.msk [vmem:[%s4 + $0x18] sm:$0xff] %vm271, %v258
  %276 = vst.msk [vmem:[%s4 + $0x20] sm:$0xff] %vm271, %v259
  %277 = vst.msk [vmem:[%s4 + $0x28] sm:$0xff] %vm271, %v260
  %278 = vst.msk [vmem:[%s4 + $0x30] sm:$0xff] %vm271, %v261
  %279 = vst.msk [vmem:[%s4 + $0x38] sm:$0xff] %vm271, %v262
  %280 = vst.msk [vmem:[%s4 + $0x40] sm:$0xff] %vm271, %v263
  %281 = vst.msk [vmem:[%s4 + $0x48] sm:$0xff] %vm271, %v264
  %282 = vst.msk [vmem:[%s4 + $0x50] sm:$0xff] %vm271, %v265
  %283 = vst.msk [vmem:[%s4 + $0x58] sm:$0xff] %vm271, %v266
  %284 = vst.msk [vmem:[%s4 + $0x60] sm:$0xff] %vm271, %v267
  %285 = vst.msk [vmem:[%s4 + $0x68] sm:$0xff] %vm271, %v268
  %286 = vst.msk [vmem:[%s4 + $0x70] sm:$0xff] %vm271, %v269
  %287 = vst.msk [vmem:[%s4 + $0x78] sm:$0xff] %vm271, %v270
  // Predicated region
  $region18: #{tpu_custom_call.1} parent=0 // pred_check
    _
  $region19: #{tpu_custom_call.1} parent=0 // pred_check_branch
    %289 = sbr.rel (0) target = $region21
  $region20: #{tpu_custom_call.1} parent=0 // pred_region
    _
  $region21: #{tpu_custom_call.1} parent=0 // pred_fallthru
    _
  // Predicated region
  $region22: #{tpu_custom_call.1} parent=0 // pred_check
    _
  $region23: #{tpu_custom_call.1} parent=0 // pred_check_branch
    %291 = sbr.rel (0) target = $region25
  $region24: #{tpu_custom_call.1} parent=0 // pred_region
    _
  $region25: #{tpu_custom_call.1} parent=0 // pred_fallthru
    _

</llo_original>
